<compile_context>
chip_gen: v7x
topology: tpu7x:2x2x1
jax: 0.10.0
libtpu: 0.0.40
codegen_flags: <defaults>
</compile_context>

<pallas_src>
import jax
import jax.numpy as jnp
from jax.experimental import pallas as pl
from jax.experimental.pallas import tpu as pltpu

D_IN = 2      # input coordinate dimension
H = 10        # hidden width
D_OUT = 1     # scalar potential per point
TN = 512      # batch tile (points per grid step), lane-dense


def mlp_kernel(x_ref, w1_ref, b1_ref, w2_ref, b2_ref, w3_ref, b3_ref, o_ref):
    x = x_ref[...]                          # (D_IN, TN), batch on lanes
    w1 = w1_ref[...]                        # (H, D_IN)

    # Layer 1 (2 -> 10): two VPU broadcast-FMAs (K=2 is too small for MXU).
    h1 = w1[:, 0:1] * x[0:1, :] + w1[:, 1:2] * x[1:2, :] + b1_ref[...]
    h1 = h1 * jax.nn.sigmoid(h1)            # SiLU (sigmoid on EUP)

    # Layer 2 (10 -> 10): single MXU matmul, f32 accumulate.
    h2 = jnp.dot(w2_ref[...], h1,
                 preferred_element_type=jnp.float32) + b2_ref[...]
    h2 = h2 * jax.nn.sigmoid(h2)

    # Layer 3 (10 -> 1): scale by weight column + cross-sublane reduce.
    out = jnp.sum(w3_ref[...] * h2, axis=0, keepdims=True) + b3_ref[...]
    o_ref[...] = out.astype(o_ref.dtype)    # (1, TN) lane-dense store


@jax.jit
def neural_network_forward(x, w1, b1, w2, b2, w3, b3):
    """x: (N, 2) f32; weights in torch Linear convention (out, in).

    Returns (N, 1) f32, matching NeuralNetwork.forward.
    """
    n = x.shape[0]
    n_pad = pl.cdiv(n, TN) * TN
    # Transposed, lane-dense input: (D_IN, n_pad) with the batch on lanes.
    xt = jnp.pad(x.T.astype(jnp.float32), ((0, 0), (0, n_pad - n)))

    # Column-shaped params for the (features, N) layout.
    b1c = b1.reshape(H, 1)
    b2c = b2.reshape(H, 1)
    w3c = w3.reshape(H, 1)      # torch (1, 10) -> (10, 1) column
    b3c = b3.reshape(1, 1)

    grid = (n_pad // TN,)
    out = pl.pallas_call(
        mlp_kernel,
        out_shape=jax.ShapeDtypeStruct((D_OUT, n_pad), jnp.float32),
        grid=grid,
        in_specs=[
            pl.BlockSpec((D_IN, TN), lambda i: (0, i)),    # x tile
            pl.BlockSpec((H, D_IN), lambda i: (0, 0)),     # W1 (full)
            pl.BlockSpec((H, 1), lambda i: (0, 0)),        # b1
            pl.BlockSpec((H, H), lambda i: (0, 0)),        # W2
            pl.BlockSpec((H, 1), lambda i: (0, 0)),        # b2
            pl.BlockSpec((H, 1), lambda i: (0, 0)),        # W3 column
            pl.BlockSpec((1, 1), lambda i: (0, 0)),        # b3
        ],
        out_specs=pl.BlockSpec((D_OUT, TN), lambda i: (0, i)),
        compiler_params=pltpu.CompilerParams(
            dimension_semantics=("parallel",)),
    )(xt, w1, b1c, w2, b2c, w3c, b3c)
    # Back to the module's (N, 1) output layout; drop padded lanes.
    return out[0, :n][:, None]


def init_params(key):
    """Deterministic init mimicking PyTorch Linear default init
    (uniform(-1/sqrt(fan_in), 1/sqrt(fan_in))), weights stored (out, in)."""
    ks = jax.random.split(key, 6)

    def uinit(k, shape, fan_in):
        bound = 1.0 / jnp.sqrt(float(fan_in))
        return jax.random.uniform(k, shape, jnp.float32, -bound, bound)

    w1 = uinit(ks[0], (H, D_IN), D_IN)
    b1 = uinit(ks[1], (H,), D_IN)
    w2 = uinit(ks[2], (H, H), H)
    b2 = uinit(ks[3], (H,), H)
    w3 = uinit(ks[4], (D_OUT, H), H)
    b3 = uinit(ks[5], (D_OUT,), H)
    return w1, b1, w2, b2, w3, b3


def reference_forward(x, w1, b1, w2, b2, w3, b3):
    hp = jax.lax.Precision.HIGHEST
    h1 = jax.nn.silu(jnp.dot(x, w1.T, precision=hp) + b1)
    h2 = jax.nn.silu(jnp.dot(h1, w2.T, precision=hp) + b2)
    return jnp.dot(h2, w3.T, precision=hp) + b3


if __name__ == "__main__":
    key = jax.random.PRNGKey(0)
    k_param, _ = jax.random.split(key)
    params = init_params(k_param)

    # Mirrors the docstring: N=100 coordinate points in 2D, fed as (N, 2).
    N = 100
    x_lin = jnp.linspace(-0.55822365, 0.6234994, N)
    y_lin = jnp.linspace(1.44172582, 0.02803776, N)
    x = jnp.stack([x_lin, y_lin], axis=1).astype(jnp.float32)   # (N, 2)

    out = neural_network_forward(x, *params)
    out = jax.block_until_ready(out)
    assert out.shape == (N, D_OUT), out.shape

    ref = reference_forward(x, *params)
    assert jnp.allclose(out, ref, atol=1e-4, rtol=1e-4), (
        float(jnp.max(jnp.abs(out - ref))))

    print("KERNEL_OK")
</pallas_src>

<mosaic_0001>
module attributes {stable_mosaic.version = 11 : i64} {
  func.func @mlp_kernel(%arg0: i32, %arg1: memref<2x512xf32, #tpu.memory_space<vmem>>, %arg2: memref<10x2xf32, #tpu.memory_space<vmem>>, %arg3: memref<10x1xf32, #tpu.memory_space<vmem>>, %arg4: memref<10x10xf32, #tpu.memory_space<vmem>>, %arg5: memref<10x1xf32, #tpu.memory_space<vmem>>, %arg6: memref<10x1xf32, #tpu.memory_space<vmem>>, %arg7: memref<1x1xf32, #tpu.memory_space<vmem>>, %arg8: memref<1x512xf32, #tpu.memory_space<vmem>>) attributes {dimension_semantics = [#tpu.dimension_semantics<parallel>], iteration_bounds = array<i64: 1>, scalar_prefetch = 0 : i64, scratch_operands = 0 : i64, tpu.core_type = #tpu.core_type<tc>, window_params = [{transform_indices = @transform_0, window_bounds = array<i64: 2, 512>}, {pipeline_mode = #tpu.pipeline_mode<synchronous>, transform_indices = @transform_1, window_bounds = array<i64: 10, 2>}, {pipeline_mode = #tpu.pipeline_mode<synchronous>, transform_indices = @transform_2, window_bounds = array<i64: 10, 1>}, {pipeline_mode = #tpu.pipeline_mode<synchronous>, transform_indices = @transform_3, window_bounds = array<i64: 10, 10>}, {pipeline_mode = #tpu.pipeline_mode<synchronous>, transform_indices = @transform_4, window_bounds = array<i64: 10, 1>}, {pipeline_mode = #tpu.pipeline_mode<synchronous>, transform_indices = @transform_5, window_bounds = array<i64: 10, 1>}, {pipeline_mode = #tpu.pipeline_mode<synchronous>, transform_indices = @transform_6, window_bounds = array<i64: 1, 1>}, {transform_indices = @transform_7, window_bounds = array<i64: 1, 512>}]} {
    %c0 = arith.constant 0 : index
    %c0_0 = arith.constant 0 : index
    %0 = vector.load %arg1[%c0, %c0_0] : memref<2x512xf32, #tpu.memory_space<vmem>>, vector<2x512xf32>
    %c0_1 = arith.constant 0 : index
    %c0_2 = arith.constant 0 : index
    %1 = vector.load %arg2[%c0_1, %c0_2] : memref<10x2xf32, #tpu.memory_space<vmem>>, vector<10x2xf32>
    %2 = vector.extract_strided_slice %1 {offsets = [0, 0], sizes = [10, 1], strides = [1, 1]} : vector<10x2xf32> to vector<10x1xf32>
    %3 = vector.extract_strided_slice %0 {offsets = [0, 0], sizes = [1, 512], strides = [1, 1]} : vector<2x512xf32> to vector<1x512xf32>
    %4 = vector.broadcast %2 : vector<10x1xf32> to vector<10x512xf32>
    %5 = vector.broadcast %3 : vector<1x512xf32> to vector<10x512xf32>
    %6 = arith.mulf %4, %5 : vector<10x512xf32>
    %7 = vector.extract_strided_slice %1 {offsets = [0, 1], sizes = [10, 1], strides = [1, 1]} : vector<10x2xf32> to vector<10x1xf32>
    %8 = vector.extract_strided_slice %0 {offsets = [1, 0], sizes = [1, 512], strides = [1, 1]} : vector<2x512xf32> to vector<1x512xf32>
    %9 = vector.broadcast %7 : vector<10x1xf32> to vector<10x512xf32>
    %10 = vector.broadcast %8 : vector<1x512xf32> to vector<10x512xf32>
    %11 = arith.mulf %9, %10 : vector<10x512xf32>
    %12 = arith.addf %6, %11 : vector<10x512xf32>
    %c0_3 = arith.constant 0 : index
    %c0_4 = arith.constant 0 : index
    %13 = vector.load %arg3[%c0_3, %c0_4] : memref<10x1xf32, #tpu.memory_space<vmem>>, vector<10x1xf32>
    %14 = vector.broadcast %13 : vector<10x1xf32> to vector<10x512xf32>
    %15 = arith.addf %12, %14 : vector<10x512xf32>
    %16 = arith.negf %15 : vector<10x512xf32>
    %17 = math.exp %16 : vector<10x512xf32>
    %cst = arith.constant 1.000000e+00 : f32
    %18 = vector.broadcast %cst : f32 to vector<10x512xf32>
    %19 = arith.addf %18, %17 : vector<10x512xf32>
    %20 = arith.divf %18, %19 : vector<10x512xf32>
    %21 = arith.mulf %15, %20 : vector<10x512xf32>
    %c0_5 = arith.constant 0 : index
    %c0_6 = arith.constant 0 : index
    %22 = vector.load %arg4[%c0_5, %c0_6] : memref<10x10xf32, #tpu.memory_space<vmem>>, vector<10x10xf32>
    %cst_7 = arith.constant dense<0.000000e+00> : vector<10x512xf32>
    %23 = tpu.matmul %22, %21, %cst_7 {dimension_numbers = #tpu.dot_dimension_numbers<[1], [0], [0], [1], [0, 0, 1, 1], [], []>} : vector<10x10xf32>, vector<10x512xf32>, vector<10x512xf32> -> vector<10x512xf32>
    %c0_8 = arith.constant 0 : index
    %c0_9 = arith.constant 0 : index
    %24 = vector.load %arg5[%c0_8, %c0_9] : memref<10x1xf32, #tpu.memory_space<vmem>>, vector<10x1xf32>
    %25 = vector.broadcast %24 : vector<10x1xf32> to vector<10x512xf32>
    %26 = arith.addf %23, %25 : vector<10x512xf32>
    %27 = arith.negf %26 : vector<10x512xf32>
    %28 = math.exp %27 : vector<10x512xf32>
    %cst_10 = arith.constant 1.000000e+00 : f32
    %29 = vector.broadcast %cst_10 : f32 to vector<10x512xf32>
    %30 = arith.addf %29, %28 : vector<10x512xf32>
    %31 = arith.divf %29, %30 : vector<10x512xf32>
    %32 = arith.mulf %26, %31 : vector<10x512xf32>
    %c0_11 = arith.constant 0 : index
    %c0_12 = arith.constant 0 : index
    %33 = vector.load %arg6[%c0_11, %c0_12] : memref<10x1xf32, #tpu.memory_space<vmem>>, vector<10x1xf32>
    %34 = vector.broadcast %33 : vector<10x1xf32> to vector<10x512xf32>
    %35 = arith.mulf %34, %32 : vector<10x512xf32>
    %cst_13 = arith.constant dense<0.000000e+00> : vector<512xf32>
    %36 = vector.multi_reduction <add>, %35, %cst_13 [0] : vector<10x512xf32> to vector<512xf32>
    %37 = vector.shape_cast %36 : vector<512xf32> to vector<1x512xf32>
    %c0_14 = arith.constant 0 : index
    %c0_15 = arith.constant 0 : index
    %38 = vector.load %arg7[%c0_14, %c0_15] : memref<1x1xf32, #tpu.memory_space<vmem>>, vector<1x1xf32>
    %39 = vector.broadcast %38 : vector<1x1xf32> to vector<1x512xf32>
    %40 = arith.addf %37, %39 : vector<1x512xf32>
    %c0_16 = arith.constant 0 : index
    %c0_17 = arith.constant 0 : index
    %41 = vector.load %arg8[%c0_16, %c0_17] : memref<1x512xf32, #tpu.memory_space<vmem>>, vector<1x512xf32>
    tpu.vector_store %arg8[%c0_16, %c0_17], %40 {strides = array<i32>} : memref<1x512xf32, #tpu.memory_space<vmem>>, vector<1x512xf32>,
    return
  }
  func.func @transform_0(%arg0: i32) -> (i32, i32) {
    %c0_i32 = arith.constant 0 : i32
    %c0_i32_0 = arith.constant 0 : i32
    return %c0_i32, %arg0 : i32, i32
  }
  func.func @transform_1(%arg0: i32) -> (i32, i32) {
    %c0_i32 = arith.constant 0 : i32
    %c0_i32_0 = arith.constant 0 : i32
    %c0_i32_1 = arith.constant 0 : i32
    return %c0_i32, %c0_i32_0 : i32, i32
  }
  func.func @transform_2(%arg0: i32) -> (i32, i32) {
    %c0_i32 = arith.constant 0 : i32
    %c0_i32_0 = arith.constant 0 : i32
    %c0_i32_1 = arith.constant 0 : i32
    return %c0_i32, %c0_i32_0 : i32, i32
  }
  func.func @transform_3(%arg0: i32) -> (i32, i32) {
    %c0_i32 = arith.constant 0 : i32
    %c0_i32_0 = arith.constant 0 : i32
    %c0_i32_1 = arith.constant 0 : i32
    return %c0_i32, %c0_i32_0 : i32, i32
  }
  func.func @transform_4(%arg0: i32) -> (i32, i32) {
    %c0_i32 = arith.constant 0 : i32
    %c0_i32_0 = arith.constant 0 : i32
    %c0_i32_1 = arith.constant 0 : i32
    return %c0_i32, %c0_i32_0 : i32, i32
  }
  func.func @transform_5(%arg0: i32) -> (i32, i32) {
    %c0_i32 = arith.constant 0 : i32
    %c0_i32_0 = arith.constant 0 : i32
    %c0_i32_1 = arith.constant 0 : i32
    return %c0_i32, %c0_i32_0 : i32, i32
  }
  func.func @transform_6(%arg0: i32) -> (i32, i32) {
    %c0_i32 = arith.constant 0 : i32
    %c0_i32_0 = arith.constant 0 : i32
    %c0_i32_1 = arith.constant 0 : i32
    return %c0_i32, %c0_i32_0 : i32, i32
  }
  func.func @transform_7(%arg0: i32) -> (i32, i32) {
    %c0_i32 = arith.constant 0 : i32
    %c0_i32_0 = arith.constant 0 : i32
    return %c0_i32, %arg0 : i32, i32
  }
}

</mosaic_0001>

<llo_original>
// kernel: neural_network_forward.1
$region0: #{neural_network_forward.1}
  #allocation0 [shape = 'u32[]', space=smem, size = 0x4, offset = 0x4, fixed_abs, tag = 'smem constant byte address 0x4 - core index']
  #allocation1 [shape = 'u32[144,128]{1,0:T(1,128)}', space=vmem, size = 0x12000, scoped, tag = 'internal scratch']
  #allocation2 [shape = 'f32[1,1]{1,0:T(1,128)S(1)}', space=vmem, size = 0x200, scoped, tag = 'scoped memory for neural_network_forward.1']
  %s0 = inlined_call_operand.vmem [shape: f32[2,512], index: 0, kind: input, shape index: {}]
  %s1 = inlined_call_operand.vmem [shape: f32[10,2], index: 1, kind: input, shape index: {}]
  %s2 = inlined_call_operand.vmem [shape: f32[10,1], index: 2, kind: input, shape index: {}]
  %s3 = inlined_call_operand.vmem [shape: f32[10,10], index: 3, kind: input, shape index: {}]
  %s4 = inlined_call_operand.vmem [shape: f32[10,1], index: 4, kind: input, shape index: {}]
  %s5 = inlined_call_operand.vmem [shape: f32[10,1], index: 5, kind: input, shape index: {}]
  %s6 = inlined_call_operand.<no memory space> [shape: f32[1,1], index: 6, kind: input, shape index: {}]
  %s7 = inlined_call_operand.vmem [shape: f32[1,512], index: 7, kind: output, shape index: {}]
  %s8 = sld [smem:[#allocation0]]
  $region38: #{neural_network_forward.1} parent=0
    _
  %s10 = ssub.s32 1, %s8
  %s11 = scalar_select 0, %s10, %s8
  %v12 = vstv %s6
  %13 = vst [vmem:[#allocation2] sm:$0x1] %v12
  // Predicated region
  $region2: #{neural_network_forward.1} parent=0 // pred_check
    _
  $region3: #{neural_network_forward.1} parent=0 // pred_check_branch
    %15 = sbr.rel (0) target = $region5
  $region4: #{neural_network_forward.1} parent=0 // pred_region
    _
  $region5: #{neural_network_forward.1} parent=0 // pred_fallthru
    _
  // Predicated region
  $region6: #{neural_network_forward.1} parent=0 // pred_check
    _
  $region7: #{neural_network_forward.1} parent=0 // pred_check_branch
    %17 = sbr.rel (0) target = $region9
  $region8: #{neural_network_forward.1} parent=0 // pred_region
    _
  $region9: #{neural_network_forward.1} parent=0 // pred_fallthru
    _
  // Predicated region
  $region10: #{neural_network_forward.1} parent=0 // pred_check
    _
  $region11: #{neural_network_forward.1} parent=0 // pred_check_branch
    %19 = sbr.rel (0) target = $region13
  $region12: #{neural_network_forward.1} parent=0 // pred_region
    _
  $region13: #{neural_network_forward.1} parent=0 // pred_fallthru
    _
  // Predicated region
  $region14: #{neural_network_forward.1} parent=0 // pred_check
    _
  $region15: #{neural_network_forward.1} parent=0 // pred_check_branch
    %21 = sbr.rel (0) target = $region17
  $region16: #{neural_network_forward.1} parent=0 // pred_region
    _
  $region17: #{neural_network_forward.1} parent=0 // pred_fallthru
    _
  // Predicated region
  $region18: #{neural_network_forward.1} parent=0 // pred_check
    _
  $region19: #{neural_network_forward.1} parent=0 // pred_check_branch
    %23 = sbr.rel (0) target = $region21
  $region20: #{neural_network_forward.1} parent=0 // pred_region
    _
  $region21: #{neural_network_forward.1} parent=0 // pred_fallthru
    _
  // Predicated region
  $region22: #{neural_network_forward.1} parent=0 // pred_check
    _
  $region23: #{neural_network_forward.1} parent=0 // pred_check_branch
    %25 = sbr.rel (0) target = $region25
  $region24: #{neural_network_forward.1} parent=0 // pred_region
    _
  $region25: #{neural_network_forward.1} parent=0 // pred_fallthru
    _
  // Predicated region
  $region26: #{neural_network_forward.1} parent=0 // pred_check
    _
  $region27: #{neural_network_forward.1} parent=0 // pred_check_branch
    %27 = sbr.rel (0) target = $region29
  $region28: #{neural_network_forward.1} parent=0 // pred_region
    _
  $region29: #{neural_network_forward.1} parent=0 // pred_fallthru
    _
  %v28 = vld [vmem:[%s0] sm:$0xff]
  %v29 = vld [vmem:[%s1] sm:$0xff]
  %v30 = vld [vmem:[%s1 + $0x8] sm:$0x3]
  %32 = vset.pattern.permute.xlu0 0
  %33 = vperm.xlu0 %32, %v29
  %v34 = vpop.permute.xlu0 %33
  %37 = vset.pattern.permute.xlu0 0
  %38 = vperm.xlu0 %37, %v30
  %v39 = vpop.permute.xlu0 %38
  %v42 = vlaneseq
  %v43 = vshrl.u32 %v42, 7
  %v44 = vsub.s32 0, %v43
  %v45 = vrot.slane %v28, %v44
  %v46 = vlaneseq
  %v47 = vshrl.u32 %v46, 7
  %v48 = vsub.s32 2, %v47
  %v49 = vrot.slane %v28, %v48
  %v50 = vlaneseq
  %v51 = vshrl.u32 %v50, 7
  %v52 = vsub.s32 4, %v51
  %v53 = vrot.slane %v28, %v52
  %v54 = vlaneseq
  %v55 = vshrl.u32 %v54, 7
  %v56 = vsub.s32 6, %v55
  %v57 = vrot.slane %v28, %v56
  %v62 = vlaneseq
  %v63 = vshrl.u32 %v62, 7
  %v64 = vsub.s32 0, %v63
  %v65 = vrot.slane %v45, %v64
  %v66 = vlaneseq
  %v67 = vshrl.u32 %v66, 7
  %v68 = vsub.s32 0, %v67
  %v69 = vrot.slane %v49, %v68
  %v70 = vlaneseq
  %v71 = vshrl.u32 %v70, 7
  %v72 = vsub.s32 0, %v71
  %v73 = vrot.slane %v53, %v72
  %v74 = vlaneseq
  %v75 = vshrl.u32 %v74, 7
  %v76 = vsub.s32 0, %v75
  %v77 = vrot.slane %v57, %v76
  %v78 = vmul.f32 %v34, %v65
  %v79 = vmul.f32 %v34, %v69
  %v80 = vmul.f32 %v34, %v73
  %v81 = vmul.f32 %v34, %v77
  %v82 = vmul.f32 %v39, %v65
  %v83 = vmul.f32 %v39, %v69
  %v84 = vmul.f32 %v39, %v73
  %v85 = vmul.f32 %v39, %v77
  %86 = vset.pattern.permute.xlu0 1
  %87 = vperm.xlu0 %86, %v29
  %v88 = vpop.permute.xlu0 %87
  %90 = vset.pattern.permute.xlu0 1
  %91 = vperm.xlu0 %90, %v30
  %v92 = vpop.permute.xlu0 %91
  %v94 = vlaneseq
  %v95 = vshrl.u32 %v94, 7
  %v96 = vsub.s32 1, %v95
  %v97 = vrot.slane %v28, %v96
  %v98 = vlaneseq
  %v99 = vshrl.u32 %v98, 7
  %v100 = vsub.s32 3, %v99
  %v101 = vrot.slane %v28, %v100
  %v102 = vlaneseq
  %v103 = vshrl.u32 %v102, 7
  %v104 = vsub.s32 5, %v103
  %v105 = vrot.slane %v28, %v104
  %v106 = vlaneseq
  %v107 = vshrl.u32 %v106, 7
  %v108 = vsub.s32 7, %v107
  %v109 = vrot.slane %v28, %v108
  %v114 = vlaneseq
  %v115 = vshrl.u32 %v114, 7
  %v116 = vsub.s32 1, %v115
  %v117 = vrot.slane %v97, %v116
  %v118 = vlaneseq
  %v119 = vshrl.u32 %v118, 7
  %v120 = vsub.s32 1, %v119
  %v121 = vrot.slane %v101, %v120
  %v122 = vlaneseq
  %v123 = vshrl.u32 %v122, 7
  %v124 = vsub.s32 1, %v123
  %v125 = vrot.slane %v105, %v124
  %v126 = vlaneseq
  %v127 = vshrl.u32 %v126, 7
  %v128 = vsub.s32 1, %v127
  %v129 = vrot.slane %v109, %v128
  %v130 = vmul.f32 %v88, %v117
  %v131 = vmul.f32 %v88, %v121
  %v132 = vmul.f32 %v88, %v125
  %v133 = vmul.f32 %v88, %v129
  %v134 = vmul.f32 %v92, %v117
  %v135 = vmul.f32 %v92, %v121
  %v136 = vmul.f32 %v92, %v125
  %v137 = vmul.f32 %v92, %v129
  %v138 = vadd.f32 %v78, %v130
  %v139 = vadd.f32 %v79, %v131
  %v140 = vadd.f32 %v80, %v132
  %v141 = vadd.f32 %v81, %v133
  %v142 = vadd.f32 %v82, %v134
  %v143 = vadd.f32 %v83, %v135
  %v144 = vadd.f32 %v84, %v136
  %v145 = vadd.f32 %v85, %v137
  %v146 = vld [vmem:[%s2] sm:$0xff]
  %v147 = vld [vmem:[%s2 + $0x8] sm:$0x3]
  %149 = vset.pattern.permute.xlu0 0
  %150 = vperm.xlu0 %149, %v146
  %v151 = vpop.permute.xlu0 %150
  %154 = vset.pattern.permute.xlu0 0
  %155 = vperm.xlu0 %154, %v147
  %v156 = vpop.permute.xlu0 %155
  %v158 = vadd.f32 %v138, %v151
  %v159 = vadd.f32 %v139, %v151
  %v160 = vadd.f32 %v140, %v151
  %v161 = vadd.f32 %v141, %v151
  %v162 = vadd.f32 %v142, %v156
  %v163 = vadd.f32 %v143, %v156
  %v164 = vadd.f32 %v144, %v156
  %v165 = vadd.f32 %v145, %v156
  %v166 = vxor.u32 %v158, 2147483648
  %v167 = vxor.u32 %v159, 2147483648
  %v168 = vxor.u32 %v160, 2147483648
  %v169 = vxor.u32 %v161, 2147483648
  %v170 = vxor.u32 %v162, 2147483648
  %v171 = vxor.u32 %v163, 2147483648
  %v172 = vxor.u32 %v164, 2147483648
  %v173 = vxor.u32 %v165, 2147483648
  %v174 = vmul.f32 %v166, 1.442695
  %v175 = vpow.pop %v174
  %v176 = vmul.f32 %v167, 1.442695
  %v177 = vpow.pop %v176
  %v178 = vmul.f32 %v168, 1.442695
  %v179 = vpow.pop %v178
  %v180 = vmul.f32 %v169, 1.442695
  %v181 = vpow.pop %v180
  %v182 = vmul.f32 %v170, 1.442695
  %v183 = vpow.pop %v182
  %v184 = vmul.f32 %v171, 1.442695
  %v185 = vpow.pop %v184
  %v186 = vmul.f32 %v172, 1.442695
  %v187 = vpow.pop %v186
  %v188 = vmul.f32 %v173, 1.442695
  %v189 = vpow.pop %v188
  %v190 = vadd.f32 %v175, 1.0
  %v191 = vadd.f32 %v177, 1.0
  %v192 = vadd.f32 %v179, 1.0
  %v193 = vadd.f32 %v181, 1.0
  %v194 = vadd.f32 %v183, 1.0
  %v195 = vadd.f32 %v185, 1.0
  %v196 = vadd.f32 %v187, 1.0
  %v197 = vadd.f32 %v189, 1.0
  %v198 = vrcp.pop %v190
  %v199 = vmul.f32 1.0, %v198
  %v200 = vrcp.pop %v191
  %v201 = vmul.f32 1.0, %v200
  %v202 = vrcp.pop %v192
  %v203 = vmul.f32 1.0, %v202
  %v204 = vrcp.pop %v193
  %v205 = vmul.f32 1.0, %v204
  %v206 = vrcp.pop %v194
  %v207 = vmul.f32 1.0, %v206
  %v208 = vrcp.pop %v195
  %v209 = vmul.f32 1.0, %v208
  %v210 = vrcp.pop %v196
  %v211 = vmul.f32 1.0, %v210
  %v212 = vrcp.pop %v197
  %v213 = vmul.f32 1.0, %v212
  %v214 = vmul.f32 %v158, %v199
  %v215 = vmul.f32 %v159, %v201
  %v216 = vmul.f32 %v160, %v203
  %v217 = vmul.f32 %v161, %v205
  %v218 = vmul.f32 %v162, %v207
  %v219 = vmul.f32 %v163, %v209
  %v220 = vmul.f32 %v164, %v211
  %v221 = vmul.f32 %v165, %v213
  %v222 = vld [vmem:[%s3] sm:$0xff]
  %v223 = vld [vmem:[%s3 + $0x8] sm:$0x3]
  %v224 = vld [vmem:[%s4] sm:$0xff]
  %v225 = vld [vmem:[%s4 + $0x8] sm:$0x3]
  %227 = vset.pattern.permute.xlu0 0
  %228 = vperm.xlu0 %227, %v224
  %v229 = vpop.permute.xlu0 %228
  %232 = vset.pattern.permute.xlu0 0
  %233 = vperm.xlu0 %232, %v225
  %v234 = vpop.permute.xlu0 %233
  %vm236 = vcmask 80896
  %v238 = vsel %vm236, %v222, 0
  %v241 = vsel %vm236, %v223, 0
  %vm243 = vcmask 1041408
  %v245 = vsel %vm243, %v218, 0
  %v248 = vsel %vm243, %v219, 0
  %v251 = vsel %vm243, %v220, 0
  %v254 = vsel %vm243, %v221, 0
  %256 = vmatprep.subr.mxu0 %v215
  %257 = vmatpush1.msra.mxu0 %v214
  %258 = vmatprep.subr.mxu0 %v248
  %259 = vmatpush1.msra.mxu0 %v245
  %260 = vmatprep.subr.mxu0 0.0
  %261 = vmatpush1.msra.mxu0 0.0
  %262 = vmatprep.subr.mxu0 0.0
  %263 = vmatpush1.msra.mxu0 0.0
  %264 = vmatprep.subr.mxu0 0.0
  %265 = vmatpush1.msra.mxu0 0.0
  %266 = vmatprep.subr.mxu0 0.0
  %267 = vmatpush1.msra.mxu0 0.0
  %268 = vmatprep.subr.mxu0 0.0
  %269 = vmatpush1.msra.mxu0 0.0
  %270 = vmatprep.subr.mxu0 0.0
  %271 = vmatpush1.msra.mxu0 0.0
  %272 = vmatprep.subr.mxu0 0.0
  %273 = vmatpush1.msra.mxu0 0.0
  %274 = vmatprep.subr.mxu0 0.0
  %275 = vmatpush1.msra.mxu0 0.0
  %276 = vmatprep.subr.mxu0 0.0
  %277 = vmatpush1.msra.mxu0 0.0
  %278 = vmatprep.subr.mxu0 0.0
  %279 = vmatpush1.msra.mxu0 0.0
  %280 = vmatprep.subr.mxu0 0.0
  %281 = vmatpush1.msra.mxu0 0.0
  %282 = vmatprep.subr.mxu0 0.0
  %283 = vmatpush1.msra.mxu0 0.0
  %284 = vmatprep.subr.mxu0 0.0
  %285 = vmatpush1.msra.mxu0 0.0
  %286 = vmatprep.subr.mxu0 0.0
  %287 = vmatpush1.msra.mxu0 0.0
  %288 = vmatprep.subr.mxu0 0.0
  %289 = vmatpush1.msra.mxu0 0.0
  %290 = vmatprep.subr.mxu0 0.0
  %291 = vmatpush1.msra.mxu0 0.0
  %292 = vmatprep.subr.mxu0 0.0
  %293 = vmatpush1.msra.mxu0 0.0
  %294 = vmatprep.subr.mxu0 0.0
  %295 = vmatpush1.msra.mxu0 0.0
  %296 = vmatprep.subr.mxu0 0.0
  %297 = vmatpush1.msra.mxu0 0.0
  %298 = vmatprep.subr.mxu0 0.0
  %299 = vmatpush1.msra.mxu0 0.0
  %300 = vmatprep.subr.mxu0 0.0
  %301 = vmatpush1.msra.mxu0 0.0
  %302 = vmatprep.subr.mxu0 0.0
  %303 = vmatpush1.msra.mxu0 0.0
  %304 = vmatprep.subr.mxu0 0.0
  %305 = vmatpush1.msra.mxu0 0.0
  %306 = vmatprep.subr.mxu0 0.0
  %307 = vmatpush1.msra.mxu0 0.0
  %308 = vmatprep.subr.mxu0 0.0
  %309 = vmatpush1.msra.mxu0 0.0
  %310 = vmatprep.subr.mxu0 0.0
  %311 = vmatpush1.msra.mxu0 0.0
  %312 = vmatprep.subr.mxu0 0.0
  %313 = vmatpush1.msra.mxu0 0.0
  %314 = vmatprep.subr.mxu0 0.0
  %315 = vmatpush1.msra.mxu0 0.0
  %316 = vmatprep.subr.mxu0 0.0
  %317 = vmatpush1.msra.mxu0 0.0
  %318 = vmatprep.subr.mxu0 0.0
  %319 = vmatpush1.msra.mxu0 0.0
  %320 = vmatprep.mubr.f32.mxu0 0.0
  %321 = vmatmul.mubr.f32.gmra.mrb[0].mxu0 %v238
  %v322 = vpop.f32.mrb[0].mxu0
  %v323 = vadd.f32 %v229, %v322
  %v324 = vpop.f32.mrb[0].mxu0
  %v325 = vadd.f32 %v229, %v324
  %326 = vmatprep.mubr.f32.mxu0 0.0
  %327 = vmatmul.mubr.f32.gmra.mrb[0].mxu0 %v241
  %v328 = vpop.f32.mrb[0].mxu0
  %v329 = vadd.f32 %v234, %v328
  %v330 = vpop.f32.mrb[0].mxu0
  %v331 = vadd.f32 %v234, %v330
  %332 = vdwg.mxu0
  %333 = vmatprep.subr.mxu0 %v217
  %334 = vmatpush1.msra.mxu0 %v216
  %335 = vmatprep.subr.mxu0 %v254
  %336 = vmatpush1.msra.mxu0 %v251
  %337 = vmatprep.subr.mxu0 0.0
  %338 = vmatpush1.msra.mxu0 0.0
  %339 = vmatprep.subr.mxu0 0.0
  %340 = vmatpush1.msra.mxu0 0.0
  %341 = vmatprep.subr.mxu0 0.0
  %342 = vmatpush1.msra.mxu0 0.0
  %343 = vmatprep.subr.mxu0 0.0
  %344 = vmatpush1.msra.mxu0 0.0
  %345 = vmatprep.subr.mxu0 0.0
  %346 = vmatpush1.msra.mxu0 0.0
  %347 = vmatprep.subr.mxu0 0.0
  %348 = vmatpush1.msra.mxu0 0.0
  %349 = vmatprep.subr.mxu0 0.0
  %350 = vmatpush1.msra.mxu0 0.0
  %351 = vmatprep.subr.mxu0 0.0
  %352 = vmatpush1.msra.mxu0 0.0
  %353 = vmatprep.subr.mxu0 0.0
  %354 = vmatpush1.msra.mxu0 0.0
  %355 = vmatprep.subr.mxu0 0.0
  %356 = vmatpush1.msra.mxu0 0.0
  %357 = vmatprep.subr.mxu0 0.0
  %358 = vmatpush1.msra.mxu0 0.0
  %359 = vmatprep.subr.mxu0 0.0
  %360 = vmatpush1.msra.mxu0 0.0
  %361 = vmatprep.subr.mxu0 0.0
  %362 = vmatpush1.msra.mxu0 0.0
  %363 = vmatprep.subr.mxu0 0.0
  %364 = vmatpush1.msra.mxu0 0.0
  %365 = vmatprep.subr.mxu0 0.0
  %366 = vmatpush1.msra.mxu0 0.0
  %367 = vmatprep.subr.mxu0 0.0
  %368 = vmatpush1.msra.mxu0 0.0
  %369 = vmatprep.subr.mxu0 0.0
  %370 = vmatpush1.msra.mxu0 0.0
  %371 = vmatprep.subr.mxu0 0.0
  %372 = vmatpush1.msra.mxu0 0.0
  %373 = vmatprep.subr.mxu0 0.0
  %374 = vmatpush1.msra.mxu0 0.0
  %375 = vmatprep.subr.mxu0 0.0
  %376 = vmatpush1.msra.mxu0 0.0
  %377 = vmatprep.subr.mxu0 0.0
  %378 = vmatpush1.msra.mxu0 0.0
  %379 = vmatprep.subr.mxu0 0.0
  %380 = vmatpush1.msra.mxu0 0.0
  %381 = vmatprep.subr.mxu0 0.0
  %382 = vmatpush1.msra.mxu0 0.0
  %383 = vmatprep.subr.mxu0 0.0
  %384 = vmatpush1.msra.mxu0 0.0
  %385 = vmatprep.subr.mxu0 0.0
  %386 = vmatpush1.msra.mxu0 0.0
  %387 = vmatprep.subr.mxu0 0.0
  %388 = vmatpush1.msra.mxu0 0.0
  %389 = vmatprep.subr.mxu0 0.0
  %390 = vmatpush1.msra.mxu0 0.0
  %391 = vmatprep.subr.mxu0 0.0
  %392 = vmatpush1.msra.mxu0 0.0
  %393 = vmatprep.subr.mxu0 0.0
  %394 = vmatpush1.msra.mxu0 0.0
  %395 = vmatprep.subr.mxu0 0.0
  %396 = vmatpush1.msra.mxu0 0.0
  %397 = vmatprep.mubr.f32.mxu0 0.0
  %398 = vmatmul.mubr.f32.gmra.mrb[0].mxu0 %v238
  %v399 = vpop.f32.mrb[0].mxu0
  %v400 = vadd.f32 %v229, %v399
  %v401 = vpop.f32.mrb[0].mxu0
  %v402 = vadd.f32 %v229, %v401
  %403 = vmatprep.mubr.f32.mxu0 0.0
  %404 = vmatmul.mubr.f32.gmra.mrb[0].mxu0 %v241
  %v405 = vpop.f32.mrb[0].mxu0
  %v406 = vadd.f32 %v234, %v405
  %v407 = vpop.f32.mrb[0].mxu0
  %v408 = vadd.f32 %v234, %v407
  %409 = vdwg.mxu0
  %v410 = vxor.u32 %v323, 2147483648
  %v411 = vxor.u32 %v325, 2147483648
  %v412 = vxor.u32 %v400, 2147483648
  %v413 = vxor.u32 %v402, 2147483648
  %v414 = vxor.u32 %v329, 2147483648
  %v415 = vxor.u32 %v331, 2147483648
  %v416 = vxor.u32 %v406, 2147483648
  %v417 = vxor.u32 %v408, 2147483648
  %v418 = vmul.f32 %v410, 1.442695
  %v419 = vpow.pop %v418
  %v420 = vmul.f32 %v411, 1.442695
  %v421 = vpow.pop %v420
  %v422 = vmul.f32 %v412, 1.442695
  %v423 = vpow.pop %v422
  %v424 = vmul.f32 %v413, 1.442695
  %v425 = vpow.pop %v424
  %v426 = vmul.f32 %v414, 1.442695
  %v427 = vpow.pop %v426
  %v428 = vmul.f32 %v415, 1.442695
  %v429 = vpow.pop %v428
  %v430 = vmul.f32 %v416, 1.442695
  %v431 = vpow.pop %v430
  %v432 = vmul.f32 %v417, 1.442695
  %v433 = vpow.pop %v432
  %v434 = vadd.f32 %v419, 1.0
  %v435 = vadd.f32 %v421, 1.0
  %v436 = vadd.f32 %v423, 1.0
  %v437 = vadd.f32 %v425, 1.0
  %v438 = vadd.f32 %v427, 1.0
  %v439 = vadd.f32 %v429, 1.0
  %v440 = vadd.f32 %v431, 1.0
  %v441 = vadd.f32 %v433, 1.0
  %v442 = vrcp.pop %v434
  %v443 = vmul.f32 1.0, %v442
  %v444 = vrcp.pop %v435
  %v445 = vmul.f32 1.0, %v444
  %v446 = vrcp.pop %v436
  %v447 = vmul.f32 1.0, %v446
  %v448 = vrcp.pop %v437
  %v449 = vmul.f32 1.0, %v448
  %v450 = vrcp.pop %v438
  %v451 = vmul.f32 1.0, %v450
  %v452 = vrcp.pop %v439
  %v453 = vmul.f32 1.0, %v452
  %v454 = vrcp.pop %v440
  %v455 = vmul.f32 1.0, %v454
  %v456 = vrcp.pop %v441
  %v457 = vmul.f32 1.0, %v456
  %v458 = vmul.f32 %v323, %v443
  %v459 = vmul.f32 %v325, %v445
  %v460 = vmul.f32 %v400, %v447
  %v461 = vmul.f32 %v402, %v449
  %v462 = vmul.f32 %v329, %v451
  %v463 = vmul.f32 %v331, %v453
  %v464 = vmul.f32 %v406, %v455
  %v465 = vmul.f32 %v408, %v457
  %v466 = vld [vmem:[%s5] sm:$0xff]
  %v467 = vld [vmem:[%s5 + $0x8] sm:$0x3]
  %469 = vset.pattern.permute.xlu0 0
  %470 = vperm.xlu0 %469, %v466
  %v471 = vpop.permute.xlu0 %470
  %474 = vset.pattern.permute.xlu0 0
  %475 = vperm.xlu0 %474, %v467
  %v476 = vpop.permute.xlu0 %475
  %v478 = vmul.f32 %v471, %v458
  %v479 = vmul.f32 %v471, %v459
  %v480 = vmul.f32 %v471, %v460
  %v481 = vmul.f32 %v471, %v461
  %v482 = vmul.f32 %v476, %v462
  %v483 = vmul.f32 %v476, %v463
  %v484 = vmul.f32 %v476, %v464
  %v485 = vmul.f32 %v476, %v465
  %v486 = vsel %vm243, %v482, 0.0
  %v487 = vadd.f32 %v478, %v486
  %v488 = vrot.slane %v487, 4
  %v489 = vadd.f32 %v487, %v488
  %v490 = vrot.slane %v489, 2
  %v491 = vadd.f32 %v489, %v490
  %v492 = vrot.slane %v491, 1
  %v493 = vadd.f32 %v491, %v492
  %v494 = vsel %vm243, %v483, 0.0
  %v495 = vadd.f32 %v479, %v494
  %v496 = vrot.slane %v495, 4
  %v497 = vadd.f32 %v495, %v496
  %v498 = vrot.slane %v497, 2
  %v499 = vadd.f32 %v497, %v498
  %v500 = vrot.slane %v499, 1
  %v501 = vadd.f32 %v499, %v500
  %v502 = vsel %vm243, %v484, 0.0
  %v503 = vadd.f32 %v480, %v502
  %v504 = vrot.slane %v503, 4
  %v505 = vadd.f32 %v503, %v504
  %v506 = vrot.slane %v505, 2
  %v507 = vadd.f32 %v505, %v506
  %v508 = vrot.slane %v507, 1
  %v509 = vadd.f32 %v507, %v508
  %v510 = vsel %vm243, %v485, 0.0
  %v511 = vadd.f32 %v481, %v510
  %v512 = vrot.slane %v511, 4
  %v513 = vadd.f32 %v511, %v512
  %v514 = vrot.slane %v513, 2
  %v515 = vadd.f32 %v513, %v514
  %v516 = vrot.slane %v515, 1
  %v517 = vadd.f32 %v515, %v516
  %v518 = vld [vmem:[#allocation2] sm:$0x1]
  %520 = vset.pattern.permute.xlu0 0
  %521 = vperm.xlu0 %520, %v518
  %v522 = vpop.permute.xlu0 %521
  %v524 = vlaneseq
  %v525 = vshrl.u32 %v524, 7
  %v526 = vsub.s32 0, %v525
  %v527 = vrot.slane %v522, %v526
  %v528 = vadd.f32 %v493, %v527
  %v529 = vadd.f32 %v501, %v527
  %v530 = vadd.f32 %v509, %v527
  %v531 = vadd.f32 %v517, %v527
  %v536 = vcombine.low %v528, %v529
  %v537 = vcombine.low %v530, %v531
  %v539 = vunpack.c.l.s4 1966171168
  %v540 = vunpack.c.0.s8 %v539
  %v541 = vlaneseq
  %v542 = vshrl.u32 %v541, 7
  %v543 = vsub.s32 %v540, %v542
  %v544 = vrot.slane %v536, %v543
  %v546 = vunpack.c.l.s4 1966171168
  %v547 = vunpack.c.0.s8 %v546
  %v548 = vlaneseq
  %v549 = vshrl.u32 %v548, 7
  %v550 = vsub.s32 %v547, %v549
  %v551 = vrot.slane %v537, %v550
  %v552 = vcombine.low %v544, %v551
  %v554 = vunpack.c.l.s4 1966171168
  %v555 = vunpack.c.0.s8 %v554
  %v556 = vlaneseq
  %v557 = vshrl.u32 %v556, 7
  %v558 = vsub.s32 %v555, %v557
  %v559 = vrot.slane %v552, %v558
  %v561 = vlaneseq
  %vm562 = vcmp.ge.s32.totalorder %v561, 0
  %vm563 = vcmp.lt.s32.totalorder %v561, 512
  %vm564 = vmand %vm562, %vm563
  %565 = vst.msk [vmem:[%s7] sm:$0xf] %vm564, %v559
  // Predicated region
  $region30: #{neural_network_forward.1} parent=0 // pred_check
    _
  $region31: #{neural_network_forward.1} parent=0 // pred_check_branch
    %567 = sbr.rel (0) target = $region33
  $region32: #{neural_network_forward.1} parent=0 // pred_region
    _
  $region33: #{neural_network_forward.1} parent=0 // pred_fallthru
    _
  // Predicated region
  $region34: #{neural_network_forward.1} parent=0 // pred_check
    _
  $region35: #{neural_network_forward.1} parent=0 // pred_check_branch
    %569 = sbr.rel (0) target = $region37
  $region36: #{neural_network_forward.1} parent=0 // pred_region
    _
  $region37: #{neural_network_forward.1} parent=0 // pred_fallthru
    _

</llo_original>
